<compile_context>
chip_gen: v5e
topology: v5e:2x2
jax: 0.10.0
libtpu: 0.0.40
codegen_flags: <defaults>
</compile_context>

<pallas_src>
import jax
import jax.numpy as jnp
from jax import lax
from jax.experimental import pallas as pl
from jax.experimental.pallas import tpu as pltpu

LN_EPS = 1e-5  # torch.nn.LayerNorm default eps


def addnorm_kernel(x_ref, y_ref, gamma_ref, beta_ref, o_ref):
    # x_ref, y_ref, o_ref:     (D, lane_tile) VMEM tiles (D on sublanes, rows on lanes)
    # gamma_ref, beta_ref:     (D, lane_tile) pre-broadcast f32 slabs (resident)
    d = x_ref.shape[0]
    inv_d = 1.0 / float(d)

    s = x_ref[...].astype(jnp.float32) + y_ref[...].astype(jnp.float32)

    # One pass over s: sum and sum-of-squares (sublane reduces, per lane/row).
    sum_s = jnp.sum(s, axis=0, keepdims=True)          # (1, lane_tile)
    sum_s2 = jnp.sum(s * s, axis=0, keepdims=True)     # (1, lane_tile)

    mean = sum_s * inv_d
    var = jnp.maximum(sum_s2 * inv_d - mean * mean, 0.0)   # biased var, as in torch LN
    inv = lax.rsqrt(var + LN_EPS)                           # EUP, effectively free

    out = (s - mean) * inv * gamma_ref[...] + beta_ref[...]
    o_ref[...] = out.astype(o_ref.dtype)


def add_norm(x, y, gamma, beta, *, lane_tile=128):
    """x, y: [B, S, D]; gamma, beta: [D]. Returns LayerNorm(y + x) over last dim."""
    assert x.shape == y.shape
    B, S, D = x.shape
    rows = B * S

    n_blocks = pl.cdiv(rows, lane_tile)
    rows_p = n_blocks * lane_tile

    # Layout plumbing in the wrapper: rows onto the lane axis, pad to 128 multiple.
    xt = jnp.moveaxis(x, -1, 0).reshape(D, rows)
    yt = jnp.moveaxis(y, -1, 0).reshape(D, rows)
    if rows_p != rows:
        pad = ((0, 0), (0, rows_p - rows))
        xt = jnp.pad(xt, pad)
        yt = jnp.pad(yt, pad)

    # Pre-broadcast + cast once (no per-grid-step broadcast inside the kernel).
    g = jnp.broadcast_to(gamma.astype(jnp.float32).reshape(D, 1), (D, lane_tile))
    b = jnp.broadcast_to(beta.astype(jnp.float32).reshape(D, 1), (D, lane_tile))

    out_t = pl.pallas_call(
        addnorm_kernel,
        out_shape=jax.ShapeDtypeStruct((D, rows_p), x.dtype),
        grid_spec=pl.GridSpec(
            grid=(n_blocks,),
            in_specs=[
                pl.BlockSpec((D, lane_tile), lambda i: (0, i)),  # x columns
                pl.BlockSpec((D, lane_tile), lambda i: (0, i)),  # y columns
                pl.BlockSpec((D, lane_tile), lambda i: (0, 0)),  # gamma (resident)
                pl.BlockSpec((D, lane_tile), lambda i: (0, 0)),  # beta  (resident)
            ],
            out_specs=pl.BlockSpec((D, lane_tile), lambda i: (0, i)),
        ),
        compiler_params=pltpu.CompilerParams(
            dimension_semantics=("parallel",),  # 2 blocks -> both TCs on v7x
        ),
    )(xt, yt, g, b)

    out = out_t[:, :rows]                      # drop lane padding
    return jnp.moveaxis(out.reshape(D, B, S), 0, -1)


def add_norm_ref(x, y, gamma, beta):
    s = y + x
    mean = jnp.mean(s, axis=-1, keepdims=True)
    var = jnp.mean((s - mean) ** 2, axis=-1, keepdims=True)
    return (s - mean) * lax.rsqrt(var + LN_EPS) * gamma + beta


if __name__ == "__main__":
    B, S, D = 2, 100, 24  # matches the PyTorch example X = torch.ones((2, 100, 24))
    key = jax.random.PRNGKey(0)
    kx, ky = jax.random.split(key)
    x = jax.random.normal(kx, (B, S, D), dtype=jnp.float32)
    y = jax.random.normal(ky, (B, S, D), dtype=jnp.float32)

    # nn.LayerNorm(24) default init: weight=1, bias=0 (deterministic)
    gamma = jnp.ones((D,), dtype=jnp.float32)
    beta = jnp.zeros((D,), dtype=jnp.float32)

    out = add_norm(x, y, gamma, beta)
    out = jax.block_until_ready(out)

    ref = add_norm_ref(x, y, gamma, beta)
    assert out.shape == (B, S, D)
    assert jnp.allclose(out, ref, atol=1e-5, rtol=1e-5), "mismatch vs reference"

    print("KERNEL_OK")
</pallas_src>

<mosaic_0001>
module attributes {stable_mosaic.version = 11 : i64} {
  func.func @addnorm_kernel(%arg0: i32, %arg1: memref<24x128xf32, #tpu.memory_space<vmem>>, %arg2: memref<24x128xf32, #tpu.memory_space<vmem>>, %arg3: memref<24x128xf32, #tpu.memory_space<vmem>>, %arg4: memref<24x128xf32, #tpu.memory_space<vmem>>, %arg5: memref<24x128xf32, #tpu.memory_space<vmem>>) attributes {dimension_semantics = [#tpu.dimension_semantics<parallel>], iteration_bounds = array<i64: 2>, scalar_prefetch = 0 : i64, scratch_operands = 0 : i64, tpu.core_type = #tpu.core_type<tc>, window_params = [{transform_indices = @transform_0, window_bounds = array<i64: 24, 128>}, {transform_indices = @transform_1, window_bounds = array<i64: 24, 128>}, {pipeline_mode = #tpu.pipeline_mode<synchronous>, transform_indices = @transform_2, window_bounds = array<i64: 24, 128>}, {pipeline_mode = #tpu.pipeline_mode<synchronous>, transform_indices = @transform_3, window_bounds = array<i64: 24, 128>}, {transform_indices = @transform_4, window_bounds = array<i64: 24, 128>}]} {
    %c0 = arith.constant 0 : index
    %c0_0 = arith.constant 0 : index
    %0 = vector.load %arg1[%c0, %c0_0] : memref<24x128xf32, #tpu.memory_space<vmem>>, vector<24x128xf32>
    %c0_1 = arith.constant 0 : index
    %c0_2 = arith.constant 0 : index
    %1 = vector.load %arg2[%c0_1, %c0_2] : memref<24x128xf32, #tpu.memory_space<vmem>>, vector<24x128xf32>
    %2 = arith.addf %0, %1 : vector<24x128xf32>
    %cst = arith.constant dense<0.000000e+00> : vector<128xf32>
    %3 = vector.multi_reduction <add>, %2, %cst [0] : vector<24x128xf32> to vector<128xf32>
    %4 = vector.shape_cast %3 : vector<128xf32> to vector<1x128xf32>
    %5 = arith.mulf %2, %2 : vector<24x128xf32>
    %cst_3 = arith.constant dense<0.000000e+00> : vector<128xf32>
    %6 = vector.multi_reduction <add>, %5, %cst_3 [0] : vector<24x128xf32> to vector<128xf32>
    %7 = vector.shape_cast %6 : vector<128xf32> to vector<1x128xf32>
    %cst_4 = arith.constant 0.0416666679 : f32
    %8 = vector.broadcast %cst_4 : f32 to vector<1x128xf32>
    %9 = arith.mulf %4, %8 : vector<1x128xf32>
    %cst_5 = arith.constant 0.0416666679 : f32
    %10 = vector.broadcast %cst_5 : f32 to vector<1x128xf32>
    %11 = arith.mulf %7, %10 : vector<1x128xf32>
    %12 = arith.mulf %9, %9 : vector<1x128xf32>
    %13 = arith.subf %11, %12 : vector<1x128xf32>
    %cst_6 = arith.constant 0.000000e+00 : f32
    %14 = vector.broadcast %cst_6 : f32 to vector<1x128xf32>
    %15 = arith.maximumf %13, %14 : vector<1x128xf32>
    %cst_7 = arith.constant 9.99999974E-6 : f32
    %16 = vector.broadcast %cst_7 : f32 to vector<1x128xf32>
    %17 = arith.addf %15, %16 : vector<1x128xf32>
    %18 = math.rsqrt %17 : vector<1x128xf32>
    %19 = vector.broadcast %9 : vector<1x128xf32> to vector<24x128xf32>
    %20 = arith.subf %2, %19 : vector<24x128xf32>
    %21 = vector.broadcast %18 : vector<1x128xf32> to vector<24x128xf32>
    %22 = arith.mulf %20, %21 : vector<24x128xf32>
    %c0_8 = arith.constant 0 : index
    %c0_9 = arith.constant 0 : index
    %23 = vector.load %arg3[%c0_8, %c0_9] : memref<24x128xf32, #tpu.memory_space<vmem>>, vector<24x128xf32>
    %24 = arith.mulf %22, %23 : vector<24x128xf32>
    %c0_10 = arith.constant 0 : index
    %c0_11 = arith.constant 0 : index
    %25 = vector.load %arg4[%c0_10, %c0_11] : memref<24x128xf32, #tpu.memory_space<vmem>>, vector<24x128xf32>
    %26 = arith.addf %24, %25 : vector<24x128xf32>
    %c0_12 = arith.constant 0 : index
    %c0_13 = arith.constant 0 : index
    %27 = vector.load %arg5[%c0_12, %c0_13] : memref<24x128xf32, #tpu.memory_space<vmem>>, vector<24x128xf32>
    tpu.vector_store %arg5[%c0_12, %c0_13], %26 {strides = array<i32>} : memref<24x128xf32, #tpu.memory_space<vmem>>, vector<24x128xf32>,
    return
  }
  func.func @transform_0(%arg0: i32) -> (i32, i32) {
    %c0_i32 = arith.constant 0 : i32
    %c0_i32_0 = arith.constant 0 : i32
    return %c0_i32, %arg0 : i32, i32
  }
  func.func @transform_1(%arg0: i32) -> (i32, i32) {
    %c0_i32 = arith.constant 0 : i32
    %c0_i32_0 = arith.constant 0 : i32
    return %c0_i32, %arg0 : i32, i32
  }
  func.func @transform_2(%arg0: i32) -> (i32, i32) {
    %c0_i32 = arith.constant 0 : i32
    %c0_i32_0 = arith.constant 0 : i32
    %c0_i32_1 = arith.constant 0 : i32
    return %c0_i32, %c0_i32_0 : i32, i32
  }
  func.func @transform_3(%arg0: i32) -> (i32, i32) {
    %c0_i32 = arith.constant 0 : i32
    %c0_i32_0 = arith.constant 0 : i32
    %c0_i32_1 = arith.constant 0 : i32
    return %c0_i32, %c0_i32_0 : i32, i32
  }
  func.func @transform_4(%arg0: i32) -> (i32, i32) {
    %c0_i32 = arith.constant 0 : i32
    %c0_i32_0 = arith.constant 0 : i32
    return %c0_i32, %arg0 : i32, i32
  }
}

</mosaic_0001>

<llo_original>
// kernel: tpu_custom_call.1
$region0: #{tpu_custom_call.1}
  #allocation0 [shape = 'u32[]', space=smem, size = 0x4, offset = 0x4, fixed_abs, tag = 'smem constant byte address 0x4 - core index']
  #allocation1 [shape = 'u32[72,128]{1,0:T(1,128)}', space=vmem, size = 0x9000, scoped, tag = 'internal scratch']
  %s0 = inlined_call_operand.hbm [shape: f32[24,256], index: 0, kind: input, shape index: {}]
  %s1 = inlined_call_operand.hbm [shape: f32[24,256], index: 1, kind: input, shape index: {}]
  %s2 = inlined_call_operand.hbm [shape: f32[24,128], index: 2, kind: input, shape index: {}]
  %s3 = inlined_call_operand.hbm [shape: f32[24,128], index: 3, kind: input, shape index: {}]
  %s4 = inlined_call_operand.hbm [shape: f32[24,256], index: 4, kind: output, shape index: {}]
  %s5 = sld [smem:[#allocation0]]
  $region65: #{tpu_custom_call.1} parent=0
    _
  %s7 = ssub.s32 1, %s5
  %s8 = scalar_select 0, %s7, %s5
  $region1: #{tpu_custom_call.1} parent=0
    #allocation2 [shape = 'u8[24576]{0}', space=vmem, size = 0x6000, scoped, tag = 'input window, operand 0']
    #allocation3 [shape = 's32[2]{0}', space=sflag, size = 0x8, scoped, tag = 'scoped memory for tpu_custom_call.1']
    #allocation4 [shape = 's32[2]{0}', space=sflag, size = 0x8, scoped, tag = 'scoped memory for tpu_custom_call.1']
    #allocation5 [shape = 'u8[24576]{0}', space=vmem, size = 0x6000, scoped, tag = 'input window, operand 1']
    #allocation6 [shape = 's32[2]{0}', space=sflag, size = 0x8, scoped, tag = 'scoped memory for tpu_custom_call.1']
    #allocation7 [shape = 'u8[12288]{0}', space=vmem, size = 0x3000, scoped, tag = 'input window, operand 2, single buffered']
    #allocation8 [shape = 'u8[12288]{0}', space=vmem, size = 0x3000, scoped, tag = 'input window, operand 3, single buffered']
    #allocation9 [shape = 's32[1]{0}', space=sflag, size = 0x4, scoped, tag = 'scoped memory for tpu_custom_call.1']
    #allocation10 [shape = 'u8[24576]{0}', space=vmem, size = 0x6000, scoped, tag = 'output window, operand 0']
    %9 = vsyncpa [#allocation3], 0
    %s10 = scalar_lea.sflag [#allocation3], 1
    %11 = vsyncpa %s10, 0
    %12 = vsyncpa [#allocation6], 0
    %s13 = scalar_lea.sflag [#allocation6], 1
    %14 = vsyncpa %s13, 0
    %15 = vsyncpa [#allocation9], 0
    %16 = vsyncpa [#allocation4], 0
    %s17 = scalar_lea.sflag [#allocation4], 1
    %18 = vsyncpa %s17, 0
    loop: start=0, step=1, limit=4
    $region2: #{tpu_custom_call.1} parent=1 // loop_pre_header
      _
    $region3: #{tpu_custom_call.1} parent=1 // loop_header
      %s20 = sphi 0, %s24
      %p21 = scmp.ge.s32.totalorder %s20, 4
      %s30 = sphi 0, %s32
      %s33 = sphi 0, %s30
      %s34 = sphi 0, %s33
      %s50 = sphi 0, %s34
      %s56 = sphi 0, %s58
      %s59 = sphi 0, %s56
      %s60 = sphi 0, %s59
      %s76 = sphi 0, %s60
      %s80 = sphi 0, %s80
      %s82 = sphi 0, %s80
      %s83 = sphi 0, %s82
      %s97 = sphi 0, %s83
      %s101 = sphi 0, %s101
      %s103 = sphi 0, %s101
      %s104 = sphi 0, %s103
      %s118 = sphi 0, %s104
      %s124 = sphi 0, %s126
      %s127 = sphi 0, %s124
      %s128 = sphi 0, %s127
      %s144 = sphi 0, %s128
    $region4: #{tpu_custom_call.1} parent=1 // loop_header_branch
      %23 = sbr.rel (%p21) target = $region8
    $region5: #{tpu_custom_call.1} parent=1 // loop_body
      %s25 = ssub.s32 %s20, 1
      %s26 = ssub.s32 %s20, 2
      %s27 = sadd.s32 %s20, 1
      %s28 = ssub.s32 %s20, %s27
      %p29 = scmp.eq.s32.totalorder %s28, 0
      %s31 = sadd.s32 %s30, 1
      %s32 = scalar_select %p29, %s30, %s31
      %p35 = pneg %p29
      %p36 = scmp.eq.s32.totalorder %s20, 1
      %p37 = por %p35, %p36
      %p38 = scmp.ne.s32.totalorder %s30, %s33
      %p39 = scmp.eq.s32.totalorder %s20, 0
      %p40 = por %p38, %p39
      %p41 = scmp.ne.s32.totalorder %s30, %s33
      %p42 = scmp.eq.s32.totalorder %s25, 1
      %p43 = por %p41, %p42
      %p44 = scmp.ne.s32.totalorder %s33, %s34
      %p45 = scmp.eq.s32.totalorder %s25, 0
      %p46 = por %p44, %p45
      %p47 = scmp.ne.s32.totalorder %s33, %s34
      %p48 = scmp.eq.s32.totalorder %s26, 1
      %p49 = por %p47, %p48
      %p51 = scmp.ne.s32.totalorder %s34, %s50
      %p52 = scmp.eq.s32.totalorder %s26, 0
      %p53 = por %p51, %p52
      %s54 = ssub.s32 %s20, %s27
      %p55 = scmp.eq.s32.totalorder %s54, 0
      %s57 = sadd.s32 %s56, 1
      %s58 = scalar_select %p55, %s56, %s57
      %p61 = pneg %p55
      %p62 = scmp.eq.s32.totalorder %s20, 1
      %p63 = por %p61, %p62
      %p64 = scmp.ne.s32.totalorder %s56, %s59
      %p65 = scmp.eq.s32.totalorder %s20, 0
      %p66 = por %p64, %p65
      %p67 = scmp.ne.s32.totalorder %s56, %s59
      %p68 = scmp.eq.s32.totalorder %s25, 1
      %p69 = por %p67, %p68
      %p70 = scmp.ne.s32.totalorder %s59, %s60
      %p71 = scmp.eq.s32.totalorder %s25, 0
      %p72 = por %p70, %p71
      %p73 = scmp.ne.s32.totalorder %s59, %s60
      %p74 = scmp.eq.s32.totalorder %s26, 1
      %p75 = por %p73, %p74
      %p77 = scmp.ne.s32.totalorder %s60, %s76
      %p78 = scmp.eq.s32.totalorder %s26, 0
      %p79 = por %p77, %p78
      %s81 = sadd.s32 %s80, 1
      %p84 = scmp.eq.s32.totalorder %s20, 1
      %p85 = scmp.ne.s32.totalorder %s80, %s82
      %p86 = scmp.eq.s32.totalorder %s20, 0
      %p87 = por %p85, %p86
      %p88 = scmp.ne.s32.totalorder %s80, %s82
      %p89 = scmp.eq.s32.totalorder %s25, 1
      %p90 = por %p88, %p89
      %p91 = scmp.ne.s32.totalorder %s82, %s83
      %p92 = scmp.eq.s32.totalorder %s25, 0
      %p93 = por %p91, %p92
      %p94 = scmp.ne.s32.totalorder %s82, %s83
      %p95 = scmp.eq.s32.totalorder %s26, 1
      %p96 = por %p94, %p95
      %p98 = scmp.ne.s32.totalorder %s83, %s97
      %p99 = scmp.eq.s32.totalorder %s26, 0
      %p100 = por %p98, %p99
      %s102 = sadd.s32 %s101, 1
      %p105 = scmp.eq.s32.totalorder %s20, 1
      %p106 = scmp.ne.s32.totalorder %s101, %s103
      %p107 = scmp.eq.s32.totalorder %s20, 0
      %p108 = por %p106, %p107
      %p109 = scmp.ne.s32.totalorder %s101, %s103
      %p110 = scmp.eq.s32.totalorder %s25, 1
      %p111 = por %p109, %p110
      %p112 = scmp.ne.s32.totalorder %s103, %s104
      %p113 = scmp.eq.s32.totalorder %s25, 0
      %p114 = por %p112, %p113
      %p115 = scmp.ne.s32.totalorder %s103, %s104
      %p116 = scmp.eq.s32.totalorder %s26, 1
      %p117 = por %p115, %p116
      %p119 = scmp.ne.s32.totalorder %s104, %s118
      %p120 = scmp.eq.s32.totalorder %s26, 0
      %p121 = por %p119, %p120
      %s122 = ssub.s32 %s20, %s27
      %p123 = scmp.eq.s32.totalorder %s122, 0
      %s125 = sadd.s32 %s124, 1
      %s126 = scalar_select %p123, %s124, %s125
      %p129 = pneg %p123
      %p130 = scmp.eq.s32.totalorder %s20, 1
      %p131 = por %p129, %p130
      %p132 = scmp.ne.s32.totalorder %s124, %s127
      %p133 = scmp.eq.s32.totalorder %s20, 0
      %p134 = por %p132, %p133
      %p135 = scmp.ne.s32.totalorder %s124, %s127
      %p136 = scmp.eq.s32.totalorder %s25, 1
      %p137 = por %p135, %p136
      %p138 = scmp.ne.s32.totalorder %s127, %s128
      %p139 = scmp.eq.s32.totalorder %s25, 0
      %p140 = por %p138, %p139
      %p141 = scmp.ne.s32.totalorder %s127, %s128
      %p142 = scmp.eq.s32.totalorder %s26, 1
      %p143 = por %p141, %p142
      %p145 = scmp.ne.s32.totalorder %s128, %s144
      %p146 = scmp.eq.s32.totalorder %s26, 0
      %p147 = por %p145, %p146
      %p148 = scmp.le.s32.totalorder 1, %s20
      %p149 = scmp.lt.s32.totalorder %s20, 3
      %p150 = pnand %p148, %p149
      %p151 = pneg %p150
      // Predicated region
      $region9: #{tpu_custom_call.1} parent=5 // pred_check
        _
      $region10: #{tpu_custom_call.1} parent=5 // pred_check_branch
        %153 = sbr.rel (%p150) target = $region12
      $region11: #{tpu_custom_call.1} parent=5 // pred_region
        %s154 = ssub.s32 %s20, 1
        // Predicated region
        $region13: #{tpu_custom_call.1} parent=11 // pred_check
          %p155 = pneg %p93
        $region14: #{tpu_custom_call.1} parent=11 // pred_check_branch
          %157 = sbr.rel (%p155) target = $region16
        $region15: #{tpu_custom_call.1} parent=11 // pred_region
          %159 = vsyncadd [#allocation6], 0
          %s160 = sshll.u32 %s2, 4
          %s161 = int_to_ptr.hbm [resolvable:$true] %s160
          %s162 = sshll.u32 [#allocation7], 4
          %s163 = int_to_ptr.vmem [resolvable:$true] %s162
          %168 = dma.hbm_to_vmem [thread:$0]  %s161, 384, %s163, [#allocation6], 128, 128, 8
        $region16: #{tpu_custom_call.1} parent=11 // pred_fallthru
          _
        // Predicated region
        $region17: #{tpu_custom_call.1} parent=11 // pred_check
          %p169 = pneg %p114
        $region18: #{tpu_custom_call.1} parent=11 // pred_check_branch
          %171 = sbr.rel (%p169) target = $region20
        $region19: #{tpu_custom_call.1} parent=11 // pred_region
          %173 = vsyncadd [#allocation9], 0
          %s174 = sshll.u32 %s3, 4
          %s175 = int_to_ptr.hbm [resolvable:$true] %s174
          %s176 = sshll.u32 [#allocation8], 4
          %s177 = int_to_ptr.vmem [resolvable:$true] %s176
          %182 = dma.hbm_to_vmem [thread:$0]  %s175, 384, %s177, [#allocation9], 128, 128, 8
        $region20: #{tpu_custom_call.1} parent=11 // pred_fallthru
          _
      $region12: #{tpu_custom_call.1} parent=5 // pred_fallthru
        _
      %p183 = scmp.lt.s32.totalorder %s20, 2
      // Predicated region
      $region21: #{tpu_custom_call.1} parent=5 // pred_check
        %p184 = pneg %p183
      $region22: #{tpu_custom_call.1} parent=5 // pred_check_branch
        %186 = sbr.rel (%p184) target = $region24
      $region23: #{tpu_custom_call.1} parent=5 // pred_region
        // Predicated region
        $region25: #{tpu_custom_call.1} parent=23 // pred_check
          %p187 = pneg %p40
        $region26: #{tpu_custom_call.1} parent=23 // pred_check_branch
          %189 = sbr.rel (%p187) target = $region28
        $region27: #{tpu_custom_call.1} parent=23 // pred_region
          %s190 = sand.u32 %s30, 1
          %s191 = scalar_lea.sflag [#allocation3], %s190
          %s192 = sand.u32 %s30, 1
          %s193 = smul.addr %s192, 24
          %s194 = scalar_lea.vmem [#allocation2], %s193
          %196 = vsyncadd %s191, 0
          %s197 = smul.addr %s20, 8
          %s198 = scalar_lea.hbm %s0, %s197
          %s199 = sshll.u32 %s198, 4
          %s200 = int_to_ptr.hbm [resolvable:$true] %s199
          %s201 = sshll.u32 %s194, 4
          %s202 = int_to_ptr.vmem [resolvable:$true] %s201
          %207 = dma.hbm_to_vmem [thread:$0]  %s200, 384, %s202, %s191, 256, 128, 8
        $region28: #{tpu_custom_call.1} parent=23 // pred_fallthru
          _
        // Predicated region
        $region29: #{tpu_custom_call.1} parent=23 // pred_check
          %p208 = pneg %p66
        $region30: #{tpu_custom_call.1} parent=23 // pred_check_branch
          %210 = sbr.rel (%p208) target = $region32
        $region31: #{tpu_custom_call.1} parent=23 // pred_region
          %s211 = sand.u32 %s20, 1
          %s212 = scalar_lea.sflag [#allocation6], %s211
          %s213 = sand.u32 %s56, 1
          %s214 = smul.addr %s213, 24
          %s215 = scalar_lea.vmem [#allocation5], %s214
          %217 = vsyncadd %s212, 0
          %s218 = smul.addr %s20, 8
          %s219 = scalar_lea.hbm %s1, %s218
          %s220 = sshll.u32 %s219, 4
          %s221 = int_to_ptr.hbm [resolvable:$true] %s220
          %s222 = sshll.u32 %s215, 4
          %s223 = int_to_ptr.vmem [resolvable:$true] %s222
          %228 = dma.hbm_to_vmem [thread:$0]  %s221, 384, %s223, %s212, 256, 128, 8
        $region32: #{tpu_custom_call.1} parent=23 // pred_fallthru
          _
      $region24: #{tpu_custom_call.1} parent=5 // pred_fallthru
        _
      %p229 = scmp.le.s32.totalorder 1, %s20
      %p230 = scmp.lt.s32.totalorder %s20, 3
      %p231 = pnand %p229, %p230
      %p232 = pneg %p231
      // Predicated region
      $region33: #{tpu_custom_call.1} parent=5 // pred_check
        _
      $region34: #{tpu_custom_call.1} parent=5 // pred_check_branch
        %234 = sbr.rel (%p231) target = $region36
      $region35: #{tpu_custom_call.1} parent=5 // pred_region
        %s235 = ssub.s32 %s20, 1
        %s236 = sand.u32 %s33, 1
        %s237 = scalar_lea.sflag [#allocation3], %s236
        %s238 = sand.u32 %s33, 1
        %s239 = smul.addr %s238, 24
        %s240 = scalar_lea.vmem [#allocation2], %s239
        // Predicated region
        $region37: #{tpu_custom_call.1} parent=35 // pred_check
          %p241 = pneg %p46
        $region38: #{tpu_custom_call.1} parent=35 // pred_check_branch
          %243 = sbr.rel (%p241) target = $region40
        $region39: #{tpu_custom_call.1} parent=35 // pred_region
          %245 = dma.done %s237, 384
        $region40: #{tpu_custom_call.1} parent=35 // pred_fallthru
          _
        %s246 = sand.u32 %s25, 1
        %s247 = scalar_lea.sflag [#allocation6], %s246
        %s248 = sand.u32 %s59, 1
        %s249 = smul.addr %s248, 24
        %s250 = scalar_lea.vmem [#allocation5], %s249
        // Predicated region
        $region41: #{tpu_custom_call.1} parent=35 // pred_check
          %p251 = pneg %p72
        $region42: #{tpu_custom_call.1} parent=35 // pred_check_branch
          %253 = sbr.rel (%p251) target = $region44
        $region43: #{tpu_custom_call.1} parent=35 // pred_region
          %255 = dma.done %s247, 384
        $region44: #{tpu_custom_call.1} parent=35 // pred_fallthru
          _
        // Predicated region
        $region45: #{tpu_custom_call.1} parent=35 // pred_check
          %p256 = pneg %p93
        $region46: #{tpu_custom_call.1} parent=35 // pred_check_branch
          %258 = sbr.rel (%p256) target = $region48
        $region47: #{tpu_custom_call.1} parent=35 // pred_region
          %260 = dma.done [#allocation6], 384
        $region48: #{tpu_custom_call.1} parent=35 // pred_fallthru
          _
        // Predicated region
        $region49: #{tpu_custom_call.1} parent=35 // pred_check
          %p261 = pneg %p114
        $region50: #{tpu_custom_call.1} parent=35 // pred_check_branch
          %263 = sbr.rel (%p261) target = $region52
        $region51: #{tpu_custom_call.1} parent=35 // pred_region
          %265 = dma.done [#allocation9], 384
        $region52: #{tpu_custom_call.1} parent=35 // pred_fallthru
          _
        %s266 = sand.u32 %s33, 1
        %s267 = scalar_lea.sflag [#allocation3], %s266
        %s268 = sand.u32 %s33, 1
        %s269 = smul.addr %s268, 24
        %s270 = scalar_lea.vmem [#allocation2], %s269
        %p271 = pneg %p46
        %p272 = pneg %p43
        %s273 = sand.u32 %s25, 1
        %s274 = scalar_lea.sflag [#allocation6], %s273
        %s275 = sand.u32 %s59, 1
        %s276 = smul.addr %s275, 24
        %s277 = scalar_lea.vmem [#allocation5], %s276
        %p278 = pneg %p72
        %p279 = pneg %p69
        %p280 = pneg %p93
        %p281 = pneg %p90
        %p282 = pneg %p114
        %p283 = pneg %p111
        %p284 = pneg %p140
        %p285 = pneg %p137
        %s286 = sand.u32 %s127, 1
        %s287 = scalar_lea.sflag [#allocation4], %s286
        %s288 = sand.u32 %s127, 1
        %s289 = smul.addr %s288, 24
        %s290 = scalar_lea.vmem [#allocation10], %s289
        %v291 = vld [vmem:[%s240] sm:$0xff]
        %v292 = vld [vmem:[%s240 + $0x8] sm:$0xff]
        %v293 = vld [vmem:[%s240 + $0x10] sm:$0xff]
        %v294 = vld [vmem:[%s250] sm:$0xff]
        %v295 = vld [vmem:[%s250 + $0x8] sm:$0xff]
        %v296 = vld [vmem:[%s250 + $0x10] sm:$0xff]
        %v297 = vadd.f32 %v291, %v294
        %v298 = vadd.f32 %v292, %v295
        %v299 = vadd.f32 %v293, %v296
        %v300 = vadd.f32 %v297, %v298
        %v301 = vadd.f32 %v300, %v299
        %v302 = vrot.slane %v301, 4
        %v303 = vadd.f32 %v301, %v302
        %v304 = vrot.slane %v303, 2
        %v305 = vadd.f32 %v303, %v304
        %v306 = vrot.slane %v305, 1
        %v307 = vadd.f32 %v305, %v306
        %v308 = vmul.f32 %v297, %v297
        %v309 = vmul.f32 %v298, %v298
        %v310 = vmul.f32 %v299, %v299
        %v311 = vadd.f32 %v308, %v309
        %v312 = vadd.f32 %v311, %v310
        %v313 = vrot.slane %v312, 4
        %v314 = vadd.f32 %v312, %v313
        %v315 = vrot.slane %v314, 2
        %v316 = vadd.f32 %v314, %v315
        %v317 = vrot.slane %v316, 1
        %v318 = vadd.f32 %v316, %v317
        %v319 = vmul.f32 %v307, 0.041666668
        %v320 = vmul.f32 %v318, 0.041666668
        %v321 = vmul.f32 %v319, %v319
        %v322 = vsub.f32 %v320, %v321
        %v323 = vmax.f32 %v322, 0.0
        %v324 = vadd.f32 %v323, 1e-05
        %v325 = vrsqrt.pop %v324
        %v326 = vmul.f32 %v325, %v324
        %v327 = vmul.f32 %v326, %v325
        %v328 = vmul.f32 0.5, %v327
        %v329 = vsub.f32 1.5, %v328
        %v330 = vmul.f32 %v325, %v329
        %vm331 = vweird.f32 %v324
        %vm332 = vweird.f32 %v325
        %vm333 = vmor %vm331, %vm332
        %v334 = vsel %vm333, %v325, %v330
        %v335 = vsub.f32 %v297, %v319
        %v336 = vsub.f32 %v298, %v319
        %v337 = vsub.f32 %v299, %v319
        %v338 = vmul.f32 %v335, %v334
        %v339 = vmul.f32 %v336, %v334
        %v340 = vmul.f32 %v337, %v334
        %v341 = vld [vmem:[#allocation7] sm:$0xff]
        %v342 = vld [vmem:[#allocation7 + $0x8] sm:$0xff]
        %v343 = vld [vmem:[#allocation7 + $0x10] sm:$0xff]
        %v344 = vmul.f32 %v338, %v341
        %v345 = vmul.f32 %v339, %v342
        %v346 = vmul.f32 %v340, %v343
        %v347 = vld [vmem:[#allocation8] sm:$0xff]
        %v348 = vld [vmem:[#allocation8 + $0x8] sm:$0xff]
        %v349 = vld [vmem:[#allocation8 + $0x10] sm:$0xff]
        %v350 = vadd.f32 %v344, %v347
        %v351 = vadd.f32 %v345, %v348
        %v352 = vadd.f32 %v346, %v349
        %353 = vst [vmem:[%s290] sm:$0xff] %v350
        %354 = vst [vmem:[%s290 + $0x8] sm:$0xff] %v351
        %355 = vst [vmem:[%s290 + $0x10] sm:$0xff] %v352
        %s356 = sand.u32 %s127, 1
        %s357 = scalar_lea.sflag [#allocation4], %s356
        %s358 = sand.u32 %s127, 1
        %s359 = smul.addr %s358, 24
        %s360 = scalar_lea.vmem [#allocation10], %s359
        // Predicated region
        $region53: #{tpu_custom_call.1} parent=35 // pred_check
          %p361 = pneg %p137
        $region54: #{tpu_custom_call.1} parent=35 // pred_check_branch
          %363 = sbr.rel (%p361) target = $region56
        $region55: #{tpu_custom_call.1} parent=35 // pred_region
          %365 = vsyncadd %s357, 0
          %s366 = smul.addr %s25, 8
          %s367 = scalar_lea.hbm %s4, %s366
          %s368 = sshll.u32 %s360, 4
          %s369 = int_to_ptr.vmem [resolvable:$true] %s368
          %s370 = sshll.u32 %s367, 4
          %s371 = int_to_ptr.hbm [resolvable:$true] %s370
          %376 = dma.vmem_to_hbm [thread:$0]  %s369, 384, %s371, %s357, 128, 256, 8
        $region56: #{tpu_custom_call.1} parent=35 // pred_fallthru
          _
      $region36: #{tpu_custom_call.1} parent=5 // pred_fallthru
        _
      %p377 = scmp.le.s32.totalorder 2, %s20
      // Predicated region
      $region57: #{tpu_custom_call.1} parent=5 // pred_check
        %p378 = pneg %p377
      $region58: #{tpu_custom_call.1} parent=5 // pred_check_branch
        %380 = sbr.rel (%p378) target = $region60
      $region59: #{tpu_custom_call.1} parent=5 // pred_region
        %s381 = ssub.s32 %s20, 2
        // Predicated region
        $region61: #{tpu_custom_call.1} parent=59 // pred_check
          %p382 = pneg %p143
        $region62: #{tpu_custom_call.1} parent=59 // pred_check_branch
          %384 = sbr.rel (%p382) target = $region64
        $region63: #{tpu_custom_call.1} parent=59 // pred_region
          %s385 = sand.u32 %s128, 1
          %s386 = scalar_lea.sflag [#allocation4], %s385
          %s387 = sand.u32 %s128, 1
          %s388 = smul.addr %s387, 24
          %s389 = scalar_lea.vmem [#allocation10], %s388
          %391 = dma.done %s386, 384
        $region64: #{tpu_custom_call.1} parent=59 // pred_fallthru
          _
      $region60: #{tpu_custom_call.1} parent=5 // pred_fallthru
        _
    $region6: #{tpu_custom_call.1} parent=1 // loop_footer
      %s24 = sadd.s32 1, %s20
    $region7: #{tpu_custom_call.1} parent=1 // loop_footer_branch
      %19 = sbr.rel target = $region3
    $region8: #{tpu_custom_call.1} parent=1 // loop_exit
      _
    %392 = vsyncpa [#allocation3], 1
    %s393 = scalar_lea.sflag [#allocation3], 1
    %394 = vsyncpa %s393, 1
    %395 = vsyncpa [#allocation6], 1
    %s396 = scalar_lea.sflag [#allocation6], 1
    %397 = vsyncpa %s396, 1
    %398 = vsyncpa [#allocation9], 1
    %399 = vsyncpa [#allocation4], 1
    %s400 = scalar_lea.sflag [#allocation4], 1
    %401 = vsyncpa %s400, 1

</llo_original>
